<compile_context>
chip_gen: v7x
topology: tpu7x:2x2x1
jax: 0.10.0
libtpu: 0.0.40
codegen_flags: <defaults>
</compile_context>

<pallas_src>
import functools
import math

import jax
import jax.numpy as jnp
from jax.experimental import pallas as pl
from jax.experimental.pallas import tpu as pltpu


def _round_up(x, m):
    return ((x + m - 1) // m) * m


def _linear_kernel(x_ref, w_ref, b_ref, o_ref):
    # (TM, K) @ (K, N) on the MXU with f32 accumulation; f32 bias add on VPU.
    acc = jnp.dot(x_ref[...], w_ref[...], preferred_element_type=jnp.float32)
    o_ref[...] = (acc + b_ref[...]).astype(o_ref.dtype)


@functools.partial(jax.jit,
                   static_argnames=("block_m", "compute_dtype", "out_dtype"))
def detection_head_beve(x, weight, bias, *, block_m=65536,
                        compute_dtype=jnp.bfloat16, out_dtype=None):
    """y = x @ weight.T + bias   (weight: [num_classes, inC], bias: [num_classes])."""
    inC = x.shape[-1]
    num_classes = weight.shape[0]
    lead_shape = x.shape[:-1]
    M = int(math.prod(lead_shape)) if lead_shape else 1
    out_dtype = out_dtype if out_dtype is not None else x.dtype
    cd = compute_dtype if compute_dtype is not None else x.dtype

    # --- Pack factor: largest p with p*inC <= 128 that divides M exactly. ---
    pack_full = max(1, 128 // inC)
    pack = 1
    for p in range(pack_full, 0, -1):
        if M % p == 0:
            pack = p
            break
    Kp = pack * inC            # packed contraction dim (<= 128 when packed)
    Np = pack * num_classes    # packed output dim
    Mp = M // pack             # packed row count

    # x: (..., inC) -> (M, inC) -> (Mp, Kp); all contiguous reshapes (free).
    # NOTE: if x already arrives as `compute_dtype` the astype is a no-op and
    # the x stream is read from HBM exactly once at the narrow width.
    x2d = x.reshape(Mp, Kp).astype(cd)

    # Block-diagonal packed weight (Kp, Np): diag blocks = weight.T, rest 0.
    wt = weight.T.astype(cd)                               # (inC, C)
    w_packed = jnp.kron(jnp.eye(pack, dtype=cd), wt) if pack > 1 else wt
    # Bias tiled so each packed output group gets the right bias; kept f32.
    b_packed = jnp.tile(bias.astype(jnp.float32), pack).reshape(1, Np)

    # --- Row-tile sizing (in packed rows). ---
    x_item = jnp.dtype(cd).itemsize
    o_item = jnp.dtype(out_dtype).itemsize
    # Double-buffered x + out tiles, lane-padded to 128 in VMEM.
    per_row_vmem = 2 * (_round_up(Kp, 128) * x_item + _round_up(Np, 128) * o_item)
    vmem_budget = 40 * 1024 * 1024                  # fits v7x 64 MiB with headroom
    cap_vmem = max(8, (vmem_budget // per_row_vmem) // 8 * 8)

    if Mp <= 8:
        tm = Mp                                     # block == full dim (allowed)
    else:
        desired = max(8, _round_up(max(1, block_m // pack), 8))
        tm_megacore = _round_up((Mp + 1) // 2, 8)   # keep >= 2 tiles for 2 TCs
        tm = max(8, min(desired, cap_vmem, tm_megacore))
    grid_m = -(-Mp // tm)                           # ragged final block is masked

    cost = pl.CostEstimate(
        flops=2 * M * inC * num_classes,
        transcendentals=0,
        bytes_accessed=(M * inC * x_item + Kp * Np * x_item + Np * 4
                        + M * num_classes * o_item))

    out2d = pl.pallas_call(
        _linear_kernel,
        out_shape=jax.ShapeDtypeStruct((Mp, Np), out_dtype),
        grid_spec=pltpu.PrefetchScalarGridSpec(
            num_scalar_prefetch=0,
            grid=(grid_m,),
            in_specs=[
                # x tile marches down the packed rows with the grid index.
                pl.BlockSpec((tm, Kp), lambda i: (i, 0)),
                # packed weight & bias: tiny, VMEM-resident across the grid.
                pl.BlockSpec((Kp, Np), lambda i: (0, 0)),
                pl.BlockSpec((1, Np), lambda i: (0, 0)),
            ],
            out_specs=pl.BlockSpec((tm, Np), lambda i: (i, 0)),
        ),
        compiler_params=pltpu.CompilerParams(
            dimension_semantics=("parallel",),      # shard row tiles across v7x TCs
            vmem_limit_bytes=48 * 1024 * 1024),
        cost_estimate=cost,
    )(x2d, w_packed, b_packed)

    # (Mp, pack*C) -> (..., C): contiguous, free.
    return out2d.reshape(*lead_shape, num_classes)


if __name__ == "__main__":
    # Module config: DetectionHead_BEVE(inC=32, num_classes=10)
    inC = 32
    num_classes = 10

    key = jax.random.PRNGKey(0)
    kx, kw, kb, kx2, kx3 = jax.random.split(key, 5)

    # Deterministic synthetic parameters (shapes match nn.Linear(inC, num_classes)).
    bound = 1.0 / (inC ** 0.5)
    weight = jax.random.uniform(kw, (num_classes, inC), jnp.float32,
                                minval=-bound, maxval=bound)
    bias = jax.random.uniform(kb, (num_classes,), jnp.float32,
                              minval=-bound, maxval=bound)

    # --- Case 1: small toy input (batch=2, seq=8, hidden=inC), default bf16 x-stream.
    x = jax.random.normal(kx, (2, 8, inC), jnp.float32)
    out = jax.block_until_ready(detection_head_beve(x, weight, bias))
    ref = x @ weight.T + bias
    assert out.shape == (2, 8, num_classes)
    assert out.dtype == x.dtype
    assert jnp.allclose(out, ref, atol=5e-2, rtol=5e-2)

    # --- Case 2: exact f32 path; exercises pack=4, multi-tile grid and the
    # ragged final block (M=200 -> Mp=50, tm=24 -> grid=3, tail block of 2 rows).
    x2 = jax.random.normal(kx2, (25, 8, inC), jnp.float32)
    out2 = jax.block_until_ready(
        detection_head_beve(x2, weight, bias, block_m=96, compute_dtype=None))
    ref2 = x2 @ weight.T + bias
    assert out2.shape == (25, 8, num_classes)
    assert jnp.allclose(out2, ref2, atol=1e-5, rtol=1e-5)

    # --- Case 3: M=21 not divisible by 4 -> reduced pack fallback (pack=3, K=96).
    x3 = jax.random.normal(kx3, (3, 7, inC), jnp.float32)
    out3 = jax.block_until_ready(
        detection_head_beve(x3, weight, bias, compute_dtype=None))
    ref3 = x3 @ weight.T + bias
    assert out3.shape == (3, 7, num_classes)
    assert jnp.allclose(out3, ref3, atol=1e-5, rtol=1e-5)

    print("KERNEL_OK")
</pallas_src>

<mosaic_0001>
module attributes {stable_mosaic.version = 11 : i64} {
  func.func @_linear_kernel(%arg0: i32, %arg1: memref<4x128xbf16, #tpu.memory_space<vmem>>, %arg2: memref<128x40xbf16, #tpu.memory_space<vmem>>, %arg3: memref<1x40xf32, #tpu.memory_space<vmem>>, %arg4: memref<4x40xf32, #tpu.memory_space<vmem>>) attributes {dimension_semantics = [#tpu.dimension_semantics<parallel>], iteration_bounds = array<i64: 1>, scalar_prefetch = 0 : i64, scratch_operands = 0 : i64, tpu.core_type = #tpu.core_type<tc>, window_params = [{transform_indices = @transform_0, window_bounds = array<i64: 4, 128>}, {pipeline_mode = #tpu.pipeline_mode<synchronous>, transform_indices = @transform_1, window_bounds = array<i64: 128, 40>}, {pipeline_mode = #tpu.pipeline_mode<synchronous>, transform_indices = @transform_2, window_bounds = array<i64: 1, 40>}, {transform_indices = @transform_3, window_bounds = array<i64: 4, 40>}]} {
    %c0 = arith.constant 0 : index
    %c0_0 = arith.constant 0 : index
    %0 = vector.load %arg1[%c0, %c0_0] : memref<4x128xbf16, #tpu.memory_space<vmem>>, vector<4x128xbf16>
    %c0_1 = arith.constant 0 : index
    %c0_2 = arith.constant 0 : index
    %1 = vector.load %arg2[%c0_1, %c0_2] : memref<128x40xbf16, #tpu.memory_space<vmem>>, vector<128x40xbf16>
    %cst = arith.constant dense<0.000000e+00> : vector<4x40xf32>
    %2 = tpu.matmul %0, %1, %cst {dimension_numbers = #tpu.dot_dimension_numbers<[1], [0], [0], [1], [0, 0, 1, 1], [], []>} : vector<4x128xbf16>, vector<128x40xbf16>, vector<4x40xf32> -> vector<4x40xf32>
    %c0_3 = arith.constant 0 : index
    %c0_4 = arith.constant 0 : index
    %3 = vector.load %arg3[%c0_3, %c0_4] : memref<1x40xf32, #tpu.memory_space<vmem>>, vector<1x40xf32>
    %4 = vector.broadcast %3 : vector<1x40xf32> to vector<4x40xf32>
    %5 = arith.addf %2, %4 : vector<4x40xf32>
    %c0_5 = arith.constant 0 : index
    %c0_6 = arith.constant 0 : index
    %6 = vector.load %arg4[%c0_5, %c0_6] : memref<4x40xf32, #tpu.memory_space<vmem>>, vector<4x40xf32>
    tpu.vector_store %arg4[%c0_5, %c0_6], %5 {strides = array<i32>} : memref<4x40xf32, #tpu.memory_space<vmem>>, vector<4x40xf32>,
    return
  }
  func.func @transform_0(%arg0: i32) -> (i32, i32) {
    %c0_i32 = arith.constant 0 : i32
    %c0_i32_0 = arith.constant 0 : i32
    return %arg0, %c0_i32 : i32, i32
  }
  func.func @transform_1(%arg0: i32) -> (i32, i32) {
    %c0_i32 = arith.constant 0 : i32
    %c0_i32_0 = arith.constant 0 : i32
    %c0_i32_1 = arith.constant 0 : i32
    return %c0_i32, %c0_i32_0 : i32, i32
  }
  func.func @transform_2(%arg0: i32) -> (i32, i32) {
    %c0_i32 = arith.constant 0 : i32
    %c0_i32_0 = arith.constant 0 : i32
    %c0_i32_1 = arith.constant 0 : i32
    return %c0_i32, %c0_i32_0 : i32, i32
  }
  func.func @transform_3(%arg0: i32) -> (i32, i32) {
    %c0_i32 = arith.constant 0 : i32
    %c0_i32_0 = arith.constant 0 : i32
    return %arg0, %c0_i32 : i32, i32
  }
}

</mosaic_0001>

<llo_original>
// kernel: tile.8
$region0: #{tile.8}
  #allocation0 [shape = 's32[1]{0}', space=sflag, size = 0x4, scoped, tag = 'scoped memory for tile.8']
  %s0 = inlined_call_operand.vmem [shape: f32[10], index: 0, kind: input, shape index: {}]
  %s1 = inlined_call_operand.vmem [shape: f32[4,10], index: 1, kind: output, shape index: {}]
  // Predicated region
  $region2: #{tile.8} parent=0 // pred_check
    _
  $region3: #{tile.8} parent=0 // pred_check_branch
    %3 = sbr.rel (0) target = $region5
  $region4: #{tile.8} parent=0 // pred_region
    _
  $region5: #{tile.8} parent=0 // pred_fallthru
    _
  %v4 = vld [vmem:[%s0] ss:$0 sm:$0xff]
  %5 = vst [vmem:[%s1] sm:$0xf] %v4

// kernel: tile.9
$region0: #{tile.9}
  %s0 = inlined_call_operand.vmem [shape: f32[4,10], index: 0, kind: input, shape index: {}]
  %s1 = inlined_call_operand.vmem [shape: f32[1,40], index: 1, kind: output, shape index: {}]
  $region1: #{tile.9} parent=0
    #allocation0 [shape = 'u8[4096]{0}', space=vmem, size = 0x1000, scoped, tag = 'scoped mem for output reshape']
    #allocation1 [shape = 'u8[4096]{0}', space=vmem, size = 0x1000, scoped, tag = 'scoped mem for input reshape']
    %s3 = sshllo.u32 0, 4
    %v4 = vld [vmem:[%s0] sm:%s3]
    %5 = vst [vmem:[#allocation1] sm:%s3] %v4
    %v6 = vld [vmem:[#allocation1] sm:$0x1]
    %vm7 = vcmask 80896
    %8 = vst.msk [vmem:[#allocation0] sm:$0x1] %vm7, %v6
    %s9 = scalar_lea.vmem [#allocation1], 3
    %v10 = vld [vmem:[%s9] sm:$0x1]
    %11 = vrot.lane.b32.xlu0 %v10, 30
    %v12 = vpop.permute.xlu0 %11
    %vm13 = vcmask 326896
    %14 = vst.msk [vmem:[#allocation0] sm:$0x1] %vm13, %v12
    %s15 = scalar_lea.vmem [#allocation1], 2
    %v16 = vld [vmem:[%s15] sm:$0x1]
    %17 = vrot.lane.b32.xlu0 %v16, 20
    %v18 = vpop.permute.xlu0 %17
    %vm19 = vcmask 244896
    %20 = vst.msk [vmem:[#allocation0] sm:$0x1] %vm19, %v18
    %s21 = scalar_lea.vmem [#allocation1], 1
    %v22 = vld [vmem:[%s21] sm:$0x1]
    %23 = vrot.lane.b32.xlu0 %v22, 10
    %v24 = vpop.permute.xlu0 %23
    %vm25 = vcmask 162896
    %26 = vst.msk [vmem:[#allocation0] sm:$0x1] %vm25, %v24
    %s28 = sshllo.u32 0, 1
    %v30 = vld [vmem:[#allocation0] sm:%s28]
    %s31 = sshllo.u32 0, 1
    %32 = vst [vmem:[%s1] sm:%s31] %v30

// kernel: detection_head_beve.1
$region0: #{detection_head_beve.1}
  #allocation0 [shape = 'u32[]', space=smem, size = 0x4, offset = 0x4, fixed_abs, tag = 'smem constant byte address 0x4 - core index']
  #allocation1 [shape = 'u32[144,128]{1,0:T(1,128)}', space=vmem, size = 0x12000, scoped, tag = 'internal scratch']
  %s0 = inlined_call_operand.vmem [shape: bf16[4,128], index: 0, kind: input, shape index: {}]
  %s1 = inlined_call_operand.vmem [shape: bf16[128,40], index: 1, kind: input, shape index: {}]
  %s2 = inlined_call_operand.vmem [shape: f32[1,40], index: 2, kind: input, shape index: {}]
  %s3 = inlined_call_operand.vmem [shape: f32[4,40], index: 3, kind: output, shape index: {}]
  %s4 = sld [smem:[#allocation0]]
  $region22: #{detection_head_beve.1} parent=0
    _
  %s6 = ssub.s32 1, %s4
  %s7 = scalar_select 0, %s6, %s4
  // Predicated region
  $region2: #{detection_head_beve.1} parent=0 // pred_check
    _
  $region3: #{detection_head_beve.1} parent=0 // pred_check_branch
    %9 = sbr.rel (0) target = $region5
  $region4: #{detection_head_beve.1} parent=0 // pred_region
    _
  $region5: #{detection_head_beve.1} parent=0 // pred_fallthru
    _
  // Predicated region
  $region6: #{detection_head_beve.1} parent=0 // pred_check
    _
  $region7: #{detection_head_beve.1} parent=0 // pred_check_branch
    %11 = sbr.rel (0) target = $region9
  $region8: #{detection_head_beve.1} parent=0 // pred_region
    _
  $region9: #{detection_head_beve.1} parent=0 // pred_fallthru
    _
  // Predicated region
  $region10: #{detection_head_beve.1} parent=0 // pred_check
    _
  $region11: #{detection_head_beve.1} parent=0 // pred_check_branch
    %13 = sbr.rel (0) target = $region13
  $region12: #{detection_head_beve.1} parent=0 // pred_region
    _
  $region13: #{detection_head_beve.1} parent=0 // pred_fallthru
    _
  %v15 = vld [vmem:[%s0] sm:$0x3]
  %v16 = vld [vmem:[%s1] sm:$0xf]
  %v17 = vld [vmem:[%s1 + $0x4] sm:$0xf]
  %v18 = vld [vmem:[%s1 + $0x8] sm:$0xf]
  %v19 = vld [vmem:[%s1 + $0xc] sm:$0xf]
  %v20 = vld [vmem:[%s1 + $0x10] sm:$0xf]
  %v21 = vld [vmem:[%s1 + $0x14] sm:$0xf]
  %v22 = vld [vmem:[%s1 + $0x18] sm:$0xf]
  %v23 = vld [vmem:[%s1 + $0x1c] sm:$0xf]
  %v24 = vld [vmem:[%s1 + $0x20] sm:$0xf]
  %v25 = vld [vmem:[%s1 + $0x24] sm:$0xf]
  %v26 = vld [vmem:[%s1 + $0x28] sm:$0xf]
  %v27 = vld [vmem:[%s1 + $0x2c] sm:$0xf]
  %v28 = vld [vmem:[%s1 + $0x30] sm:$0xf]
  %v29 = vld [vmem:[%s1 + $0x34] sm:$0xf]
  %v30 = vld [vmem:[%s1 + $0x38] sm:$0xf]
  %v31 = vld [vmem:[%s1 + $0x3c] sm:$0xf]
  %v32 = vld [vmem:[%s2] sm:$0x1]
  %v34 = vlaneseq
  %v35 = vshrl.u32 %v34, 7
  %v36 = vsub.s32 0, %v35
  %v37 = vrot.slane %v32, %v36
  %v55 = vunpack.c.l.b16 %v16
  %v56 = vunpack.c.l.b16 %v17
  %v57 = vunpack.c.l.b16 %v18
  %v58 = vunpack.c.l.b16 %v19
  %v59 = vunpack.c.l.b16 %v20
  %v60 = vunpack.c.l.b16 %v21
  %v61 = vunpack.c.l.b16 %v22
  %v62 = vunpack.c.l.b16 %v23
  %v63 = vunpack.c.l.b16 %v24
  %v64 = vunpack.c.l.b16 %v25
  %v65 = vunpack.c.l.b16 %v26
  %v66 = vunpack.c.l.b16 %v27
  %v67 = vunpack.c.l.b16 %v28
  %v68 = vunpack.c.l.b16 %v29
  %v69 = vunpack.c.l.b16 %v30
  %v70 = vunpack.c.l.b16 %v31
  %v71 = vpack.c.b16 %v56, %v55
  %v72 = vpack.c.b16 %v58, %v57
  %v73 = vpack.c.b16 %v60, %v59
  %v74 = vpack.c.b16 %v62, %v61
  %v75 = vpack.c.b16 %v64, %v63
  %v76 = vpack.c.b16 %v66, %v65
  %v77 = vpack.c.b16 %v68, %v67
  %v78 = vpack.c.b16 %v70, %v69
  %87 = vmatprep.subr.bf16.mxu0 0
  %88 = vmatpush1.bf16.msra.mxu0 %v71
  %89 = vmatprep.subr.bf16.mxu0 0
  %90 = vmatpush1.bf16.msra.mxu0 %v72
  %91 = vmatprep.subr.bf16.mxu0 0
  %92 = vmatpush1.bf16.msra.mxu0 %v73
  %93 = vmatprep.subr.bf16.mxu0 0
  %94 = vmatpush1.bf16.msra.mxu0 %v74
  %95 = vmatprep.subr.bf16.mxu0 0
  %96 = vmatpush1.bf16.msra.mxu0 %v75
  %97 = vmatprep.subr.bf16.mxu0 0
  %98 = vmatpush1.bf16.msra.mxu0 %v76
  %99 = vmatprep.subr.bf16.mxu0 0
  %100 = vmatpush1.bf16.msra.mxu0 %v77
  %101 = vmatprep.subr.bf16.mxu0 0
  %102 = vmatpush1.bf16.msra.mxu0 %v78
  %103 = vmatprep.subr.bf16.mxu0 0
  %104 = vmatpush1.bf16.msra.mxu0 0
  %105 = vmatprep.subr.bf16.mxu0 0
  %106 = vmatpush1.bf16.msra.mxu0 0
  %107 = vmatprep.subr.bf16.mxu0 0
  %108 = vmatpush1.bf16.msra.mxu0 0
  %109 = vmatprep.subr.bf16.mxu0 0
  %110 = vmatpush1.bf16.msra.mxu0 0
  %111 = vmatprep.subr.bf16.mxu0 0
  %112 = vmatpush1.bf16.msra.mxu0 0
  %113 = vmatprep.subr.bf16.mxu0 0
  %114 = vmatpush1.bf16.msra.mxu0 0
  %115 = vmatprep.subr.bf16.mxu0 0
  %116 = vmatpush1.bf16.msra.mxu0 0
  %117 = vmatprep.subr.bf16.mxu0 0
  %118 = vmatpush1.bf16.msra.mxu0 0
  %119 = vmatprep.mubr.bf16.mxu0 0
  %120 = vmatmul.mubr.bf16.gmra.mrb[0].mxu0 %v15
  %v121 = vpop.f32.mrb[0].mxu0
  %v122 = vadd.f32 %v37, %v121
  %v123 = vpop.f32.mrb[0].mxu0
  %v124 = vpop.f32.mrb[0].mxu0
  %v125 = vpop.f32.mrb[0].mxu0
  %126 = vdwg.mxu0
  %vm127 = vcmask 322560
  %128 = vst.msk [vmem:[%s3] sm:$0xf] %vm127, %v122
  // Predicated region
  $region14: #{detection_head_beve.1} parent=0 // pred_check
    _
  $region15: #{detection_head_beve.1} parent=0 // pred_check_branch
    %130 = sbr.rel (0) target = $region17
  $region16: #{detection_head_beve.1} parent=0 // pred_region
    _
  $region17: #{detection_head_beve.1} parent=0 // pred_fallthru
    _
  // Predicated region
  $region18: #{detection_head_beve.1} parent=0 // pred_check
    _
  $region19: #{detection_head_beve.1} parent=0 // pred_check_branch
    %132 = sbr.rel (0) target = $region21
  $region20: #{detection_head_beve.1} parent=0 // pred_region
    _
  $region21: #{detection_head_beve.1} parent=0 // pred_fallthru
    _

</llo_original>
